<compile_context>
chip_gen: v7x
topology: tpu7x:2x2x1
jax: 0.10.0
libtpu: 0.0.40
codegen_flags: <defaults>
</compile_context>

<pallas_src>
import jax
import jax.numpy as jnp
from jax import lax
from jax.experimental import pallas as pl
from jax.experimental.pallas import tpu as pltpu


def _round_up(x, m):
    return ((x + m - 1) // m) * m


def _actor_kernel(obs_ref, w1_ref, b1_ref, g_ref, beta_ref,
                  w2_ref, b2_ref, w3_ref, b3_ref, w4_ref, b4_ref,
                  mu_ref):
    f32 = jnp.float32

    # ---- trunk: Linear -> LayerNorm(eps=1e-5) -> Tanh ----
    # Operands hit the MXU in their stored dtype (bf16 runs at native rate);
    # accumulation is f32 via preferred_element_type.  LN math stays f32.
    h = jnp.dot(obs_ref[...], w1_ref[...], preferred_element_type=f32)
    h = h + b1_ref[...]                                    # (tb, feat) f32
    mean = jnp.mean(h, axis=-1, keepdims=True)
    centered = h - mean
    var = jnp.mean(centered * centered, axis=-1, keepdims=True)
    h = centered * lax.rsqrt(var + 1e-5)
    h = h * g_ref[...] + beta_ref[...]
    h = jnp.tanh(h)

    # ---- policy MLP: Linear -> ReLU -> Linear -> ReLU -> Linear -> Tanh ----
    x = jnp.dot(h.astype(w2_ref.dtype), w2_ref[...], preferred_element_type=f32)
    x = jnp.maximum(x + b2_ref[...], 0.0)
    x = jnp.dot(x.astype(w3_ref.dtype), w3_ref[...], preferred_element_type=f32)
    x = jnp.maximum(x + b3_ref[...], 0.0)
    mu = jnp.dot(x.astype(w4_ref.dtype), w4_ref[...], preferred_element_type=f32)
    mu = jnp.tanh(mu + b4_ref[...])                        # (tb, act_pad)

    mu_ref[...] = mu.astype(mu_ref.dtype)


def actor_forward(obs, params, std, *, block_b=256):
    """DrQ-v2 Actor forward.  Returns (mu, std) — TruncatedNormal parameters."""
    w1, b1, gamma, beta, w2, b2, w3, b3, w4, b4 = params
    batch, repr_dim = obs.shape
    feature_dim = w1.shape[1]
    hidden_dim = w2.shape[1]
    action_dim = w4.shape[1]
    dtype = obs.dtype

    # Lane-dense policy head: pad W4/b4 columns (and the mu output) to 128k.
    act_pad = _round_up(max(action_dim, 128), 128)
    if act_pad != action_dim:
        w4 = jnp.zeros((hidden_dim, act_pad), w4.dtype).at[:, :action_dim].set(w4)
        b4 = jnp.zeros((act_pad,), b4.dtype).at[:action_dim].set(b4)

    # Batch tile: >= 2 grid steps for moderate batches (v7x: 2 TensorCores).
    if batch <= 8:
        tb = batch
    else:
        tb = min(block_b, _round_up(pl.cdiv(batch, 2), 8))
    grid = (pl.cdiv(batch, tb),)

    row = lambda v: v.reshape(1, -1)                       # biases as (1, D) rows
    b1r, gr, br = row(b1), row(gamma), row(beta)
    b2r, b3r, b4r = row(b2), row(b3), row(b4)

    # Constant-index weights stay VMEM-resident across batch tiles; single
    # buffer them (they are never re-fetched) to respect v7x's 64 MiB VMEM.
    def resident(shape):
        return pl.BlockSpec(shape, lambda i: (0, 0), pipeline_mode=pl.Buffered(1))

    # Explicit VMEM budget: resident weights (x1) + streamed obs/mu (x2 each)
    # + f32 intermediates, ~25% headroom, clamped to [32 MiB, 64 MiB].
    operands = (w1, b1r, gr, br, w2, b2r, w3, b3r, w4, b4r)
    resident_bytes = sum(int(a.size) * a.dtype.itemsize for a in operands)
    stream_bytes = 2 * tb * (repr_dim * obs.dtype.itemsize
                             + act_pad * jnp.dtype(dtype).itemsize)
    activ_bytes = 4 * tb * (repr_dim + feature_dim + 2 * hidden_dim + act_pad)
    vmem_limit = int(1.25 * (resident_bytes + stream_bytes + activ_bytes)) + (2 << 20)
    vmem_limit = max(min(vmem_limit, 64 * 1024 * 1024), 32 * 1024 * 1024)

    mu_pad = pl.pallas_call(
        _actor_kernel,
        out_shape=jax.ShapeDtypeStruct((batch, act_pad), dtype),
        grid=grid,
        in_specs=[
            pl.BlockSpec((tb, repr_dim), lambda i: (i, 0)),      # obs batch tile
            resident((repr_dim, feature_dim)),                   # W1
            resident((1, feature_dim)),                          # b1
            resident((1, feature_dim)),                          # LN gamma
            resident((1, feature_dim)),                          # LN beta
            resident((feature_dim, hidden_dim)),                 # W2
            resident((1, hidden_dim)),                           # b2
            resident((hidden_dim, hidden_dim)),                  # W3
            resident((1, hidden_dim)),                           # b3
            resident((hidden_dim, act_pad)),                     # W4 (padded)
            resident((1, act_pad)),                              # b4 (padded)
        ],
        out_specs=pl.BlockSpec((tb, act_pad), lambda i: (i, 0)),
        compiler_params=pltpu.CompilerParams(
            dimension_semantics=("parallel",),
            vmem_limit_bytes=vmem_limit),
    )(obs, w1, b1r, gr, br, w2, b2r, w3, b3r, w4, b4r)

    mu = mu_pad[:, :action_dim]
    # std is a constant broadcast — done by XLA, not inside the fused kernel.
    std_out = jnp.full((batch, action_dim), std, dtype=mu.dtype)
    return mu, std_out


def actor_reference(obs, params, std):
    w1, b1, gamma, beta, w2, b2, w3, b3, w4, b4 = params
    h = obs @ w1 + b1
    mean = h.mean(-1, keepdims=True)
    var = ((h - mean) ** 2).mean(-1, keepdims=True)
    h = (h - mean) / jnp.sqrt(var + 1e-5) * gamma + beta
    h = jnp.tanh(h)
    x = jnp.maximum(h @ w2 + b2, 0.0)
    x = jnp.maximum(x @ w3 + b3, 0.0)
    mu = jnp.tanh(x @ w4 + b4)
    return mu, jnp.full_like(mu, std)


if __name__ == "__main__":
    repr_dim, feature_dim, hidden_dim, action_dim = 64, 32, 32, 6
    std = 0.2

    key = jax.random.PRNGKey(0)
    ks = jax.random.split(key, 6)
    params = (
        jax.random.normal(ks[1], (repr_dim, feature_dim), jnp.float32) * 0.1,
        jnp.zeros((feature_dim,), jnp.float32),
        jnp.ones((feature_dim,), jnp.float32),    # LayerNorm gamma
        jnp.zeros((feature_dim,), jnp.float32),   # LayerNorm beta
        jax.random.normal(ks[2], (feature_dim, hidden_dim), jnp.float32) * 0.1,
        jnp.zeros((hidden_dim,), jnp.float32),
        jax.random.normal(ks[3], (hidden_dim, hidden_dim), jnp.float32) * 0.1,
        jnp.zeros((hidden_dim,), jnp.float32),
        jax.random.normal(ks[4], (hidden_dim, action_dim), jnp.float32) * 0.1,
        jnp.zeros((action_dim,), jnp.float32),
    )

    # Small single-tile case and a multi-tile case (exercises trailing-pad rows).
    for batch in (8, 24):
        obs = jax.random.normal(ks[0], (batch, repr_dim), dtype=jnp.float32)
        mu, std_out = jax.block_until_ready(actor_forward(obs, params, std))
        assert mu.shape == (batch, action_dim)
        assert std_out.shape == (batch, action_dim)

        mu_ref, std_ref = actor_reference(obs, params, std)
        assert jnp.allclose(mu, mu_ref, atol=1e-4), float(jnp.max(jnp.abs(mu - mu_ref)))
        assert jnp.allclose(std_out, std_ref, atol=1e-6)

    print("KERNEL_OK")
</pallas_src>

<mosaic_0001>
module attributes {stable_mosaic.version = 11 : i64} {
  func.func @_actor_kernel(%arg0: i32, %arg1: memref<8x64xf32, #tpu.memory_space<vmem>>, %arg2: memref<64x32xf32, #tpu.memory_space<vmem>>, %arg3: memref<1x32xf32, #tpu.memory_space<vmem>>, %arg4: memref<1x32xf32, #tpu.memory_space<vmem>>, %arg5: memref<1x32xf32, #tpu.memory_space<vmem>>, %arg6: memref<32x32xf32, #tpu.memory_space<vmem>>, %arg7: memref<1x32xf32, #tpu.memory_space<vmem>>, %arg8: memref<32x32xf32, #tpu.memory_space<vmem>>, %arg9: memref<1x32xf32, #tpu.memory_space<vmem>>, %arg10: memref<32x128xf32, #tpu.memory_space<vmem>>, %arg11: memref<1x128xf32, #tpu.memory_space<vmem>>, %arg12: memref<8x128xf32, #tpu.memory_space<vmem>>) attributes {dimension_semantics = [#tpu.dimension_semantics<parallel>], iteration_bounds = array<i64: 1>, scalar_prefetch = 0 : i64, scratch_operands = 0 : i64, tpu.core_type = #tpu.core_type<tc>, window_params = [{transform_indices = @transform_0, window_bounds = array<i64: 8, 64>}, {pipeline_mode = #tpu.pipeline_mode<synchronous>, transform_indices = @transform_1, window_bounds = array<i64: 64, 32>}, {pipeline_mode = #tpu.pipeline_mode<synchronous>, transform_indices = @transform_2, window_bounds = array<i64: 1, 32>}, {pipeline_mode = #tpu.pipeline_mode<synchronous>, transform_indices = @transform_3, window_bounds = array<i64: 1, 32>}, {pipeline_mode = #tpu.pipeline_mode<synchronous>, transform_indices = @transform_4, window_bounds = array<i64: 1, 32>}, {pipeline_mode = #tpu.pipeline_mode<synchronous>, transform_indices = @transform_5, window_bounds = array<i64: 32, 32>}, {pipeline_mode = #tpu.pipeline_mode<synchronous>, transform_indices = @transform_6, window_bounds = array<i64: 1, 32>}, {pipeline_mode = #tpu.pipeline_mode<synchronous>, transform_indices = @transform_7, window_bounds = array<i64: 32, 32>}, {pipeline_mode = #tpu.pipeline_mode<synchronous>, transform_indices = @transform_8, window_bounds = array<i64: 1, 32>}, {pipeline_mode = #tpu.pipeline_mode<synchronous>, transform_indices = @transform_9, window_bounds = array<i64: 32, 128>}, {pipeline_mode = #tpu.pipeline_mode<synchronous>, transform_indices = @transform_10, window_bounds = array<i64: 1, 128>}, {transform_indices = @transform_11, window_bounds = array<i64: 8, 128>}]} {
    %c0 = arith.constant 0 : index
    %c0_0 = arith.constant 0 : index
    %0 = vector.load %arg1[%c0, %c0_0] : memref<8x64xf32, #tpu.memory_space<vmem>>, vector<8x64xf32>
    %c0_1 = arith.constant 0 : index
    %c0_2 = arith.constant 0 : index
    %1 = vector.load %arg2[%c0_1, %c0_2] : memref<64x32xf32, #tpu.memory_space<vmem>>, vector<64x32xf32>
    %cst = arith.constant dense<0.000000e+00> : vector<8x32xf32>
    %2 = tpu.matmul %0, %1, %cst {dimension_numbers = #tpu.dot_dimension_numbers<[1], [0], [0], [1], [0, 0, 1, 1], [], []>} : vector<8x64xf32>, vector<64x32xf32>, vector<8x32xf32> -> vector<8x32xf32>
    %c0_3 = arith.constant 0 : index
    %c0_4 = arith.constant 0 : index
    %3 = vector.load %arg3[%c0_3, %c0_4] : memref<1x32xf32, #tpu.memory_space<vmem>>, vector<1x32xf32>
    %4 = vector.broadcast %3 : vector<1x32xf32> to vector<8x32xf32>
    %5 = arith.addf %2, %4 : vector<8x32xf32>
    %cst_5 = arith.constant dense<0.000000e+00> : vector<8xf32>
    %6 = vector.multi_reduction <add>, %5, %cst_5 [1] : vector<8x32xf32> to vector<8xf32>
    %7 = vector.shape_cast %6 : vector<8xf32> to vector<8x1xf32>
    %cst_6 = arith.constant 3.200000e+01 : f32
    %8 = vector.broadcast %cst_6 : f32 to vector<8x1xf32>
    %9 = arith.divf %7, %8 : vector<8x1xf32>
    %10 = vector.broadcast %9 : vector<8x1xf32> to vector<8x32xf32>
    %11 = arith.subf %5, %10 : vector<8x32xf32>
    %12 = arith.mulf %11, %11 : vector<8x32xf32>
    %cst_7 = arith.constant dense<0.000000e+00> : vector<8xf32>
    %13 = vector.multi_reduction <add>, %12, %cst_7 [1] : vector<8x32xf32> to vector<8xf32>
    %14 = vector.shape_cast %13 : vector<8xf32> to vector<8x1xf32>
    %cst_8 = arith.constant 3.200000e+01 : f32
    %15 = vector.broadcast %cst_8 : f32 to vector<8x1xf32>
    %16 = arith.divf %14, %15 : vector<8x1xf32>
    %cst_9 = arith.constant 9.99999974E-6 : f32
    %17 = vector.broadcast %cst_9 : f32 to vector<8x1xf32>
    %18 = arith.addf %16, %17 : vector<8x1xf32>
    %19 = math.rsqrt %18 : vector<8x1xf32>
    %20 = vector.broadcast %19 : vector<8x1xf32> to vector<8x32xf32>
    %21 = arith.mulf %11, %20 : vector<8x32xf32>
    %c0_10 = arith.constant 0 : index
    %c0_11 = arith.constant 0 : index
    %22 = vector.load %arg4[%c0_10, %c0_11] : memref<1x32xf32, #tpu.memory_space<vmem>>, vector<1x32xf32>
    %23 = vector.broadcast %22 : vector<1x32xf32> to vector<8x32xf32>
    %24 = arith.mulf %21, %23 : vector<8x32xf32>
    %c0_12 = arith.constant 0 : index
    %c0_13 = arith.constant 0 : index
    %25 = vector.load %arg5[%c0_12, %c0_13] : memref<1x32xf32, #tpu.memory_space<vmem>>, vector<1x32xf32>
    %26 = vector.broadcast %25 : vector<1x32xf32> to vector<8x32xf32>
    %27 = arith.addf %24, %26 : vector<8x32xf32>
    %28 = math.tanh %27 : vector<8x32xf32>
    %c0_14 = arith.constant 0 : index
    %c0_15 = arith.constant 0 : index
    %29 = vector.load %arg6[%c0_14, %c0_15] : memref<32x32xf32, #tpu.memory_space<vmem>>, vector<32x32xf32>
    %cst_16 = arith.constant dense<0.000000e+00> : vector<8x32xf32>
    %30 = tpu.matmul %28, %29, %cst_16 {dimension_numbers = #tpu.dot_dimension_numbers<[1], [0], [0], [1], [0, 0, 1, 1], [], []>} : vector<8x32xf32>, vector<32x32xf32>, vector<8x32xf32> -> vector<8x32xf32>
    %c0_17 = arith.constant 0 : index
    %c0_18 = arith.constant 0 : index
    %31 = vector.load %arg7[%c0_17, %c0_18] : memref<1x32xf32, #tpu.memory_space<vmem>>, vector<1x32xf32>
    %32 = vector.broadcast %31 : vector<1x32xf32> to vector<8x32xf32>
    %33 = arith.addf %30, %32 : vector<8x32xf32>
    %cst_19 = arith.constant 0.000000e+00 : f32
    %34 = vector.broadcast %cst_19 : f32 to vector<8x32xf32>
    %35 = arith.maximumf %33, %34 : vector<8x32xf32>
    %c0_20 = arith.constant 0 : index
    %c0_21 = arith.constant 0 : index
    %36 = vector.load %arg8[%c0_20, %c0_21] : memref<32x32xf32, #tpu.memory_space<vmem>>, vector<32x32xf32>
    %cst_22 = arith.constant dense<0.000000e+00> : vector<8x32xf32>
    %37 = tpu.matmul %35, %36, %cst_22 {dimension_numbers = #tpu.dot_dimension_numbers<[1], [0], [0], [1], [0, 0, 1, 1], [], []>} : vector<8x32xf32>, vector<32x32xf32>, vector<8x32xf32> -> vector<8x32xf32>
    %c0_23 = arith.constant 0 : index
    %c0_24 = arith.constant 0 : index
    %38 = vector.load %arg9[%c0_23, %c0_24] : memref<1x32xf32, #tpu.memory_space<vmem>>, vector<1x32xf32>
    %39 = vector.broadcast %38 : vector<1x32xf32> to vector<8x32xf32>
    %40 = arith.addf %37, %39 : vector<8x32xf32>
    %cst_25 = arith.constant 0.000000e+00 : f32
    %41 = vector.broadcast %cst_25 : f32 to vector<8x32xf32>
    %42 = arith.maximumf %40, %41 : vector<8x32xf32>
    %c0_26 = arith.constant 0 : index
    %c0_27 = arith.constant 0 : index
    %43 = vector.load %arg10[%c0_26, %c0_27] : memref<32x128xf32, #tpu.memory_space<vmem>>, vector<32x128xf32>
    %cst_28 = arith.constant dense<0.000000e+00> : vector<8x128xf32>
    %44 = tpu.matmul %42, %43, %cst_28 {dimension_numbers = #tpu.dot_dimension_numbers<[1], [0], [0], [1], [0, 0, 1, 1], [], []>} : vector<8x32xf32>, vector<32x128xf32>, vector<8x128xf32> -> vector<8x128xf32>
    %c0_29 = arith.constant 0 : index
    %c0_30 = arith.constant 0 : index
    %45 = vector.load %arg11[%c0_29, %c0_30] : memref<1x128xf32, #tpu.memory_space<vmem>>, vector<1x128xf32>
    %46 = vector.broadcast %45 : vector<1x128xf32> to vector<8x128xf32>
    %47 = arith.addf %44, %46 : vector<8x128xf32>
    %48 = math.tanh %47 : vector<8x128xf32>
    %c0_31 = arith.constant 0 : index
    %c0_32 = arith.constant 0 : index
    %49 = vector.load %arg12[%c0_31, %c0_32] : memref<8x128xf32, #tpu.memory_space<vmem>>, vector<8x128xf32>
    tpu.vector_store %arg12[%c0_31, %c0_32], %48 {strides = array<i32>} : memref<8x128xf32, #tpu.memory_space<vmem>>, vector<8x128xf32>,
    return
  }
  func.func @transform_0(%arg0: i32) -> (i32, i32) {
    %c0_i32 = arith.constant 0 : i32
    %c0_i32_0 = arith.constant 0 : i32
    return %arg0, %c0_i32 : i32, i32
  }
  func.func @transform_1(%arg0: i32) -> (i32, i32) {
    %c0_i32 = arith.constant 0 : i32
    %c0_i32_0 = arith.constant 0 : i32
    %c0_i32_1 = arith.constant 0 : i32
    return %c0_i32, %c0_i32_0 : i32, i32
  }
  func.func @transform_2(%arg0: i32) -> (i32, i32) {
    %c0_i32 = arith.constant 0 : i32
    %c0_i32_0 = arith.constant 0 : i32
    %c0_i32_1 = arith.constant 0 : i32
    return %c0_i32, %c0_i32_0 : i32, i32
  }
  func.func @transform_3(%arg0: i32) -> (i32, i32) {
    %c0_i32 = arith.constant 0 : i32
    %c0_i32_0 = arith.constant 0 : i32
    %c0_i32_1 = arith.constant 0 : i32
    return %c0_i32, %c0_i32_0 : i32, i32
  }
  func.func @transform_4(%arg0: i32) -> (i32, i32) {
    %c0_i32 = arith.constant 0 : i32
    %c0_i32_0 = arith.constant 0 : i32
    %c0_i32_1 = arith.constant 0 : i32
    return %c0_i32, %c0_i32_0 : i32, i32
  }
  func.func @transform_5(%arg0: i32) -> (i32, i32) {
    %c0_i32 = arith.constant 0 : i32
    %c0_i32_0 = arith.constant 0 : i32
    %c0_i32_1 = arith.constant 0 : i32
    return %c0_i32, %c0_i32_0 : i32, i32
  }
  func.func @transform_6(%arg0: i32) -> (i32, i32) {
    %c0_i32 = arith.constant 0 : i32
    %c0_i32_0 = arith.constant 0 : i32
    %c0_i32_1 = arith.constant 0 : i32
    return %c0_i32, %c0_i32_0 : i32, i32
  }
  func.func @transform_7(%arg0: i32) -> (i32, i32) {
    %c0_i32 = arith.constant 0 : i32
    %c0_i32_0 = arith.constant 0 : i32
    %c0_i32_1 = arith.constant 0 : i32
    return %c0_i32, %c0_i32_0 : i32, i32
  }
  func.func @transform_8(%arg0: i32) -> (i32, i32) {
    %c0_i32 = arith.constant 0 : i32
    %c0_i32_0 = arith.constant 0 : i32
    %c0_i32_1 = arith.constant 0 : i32
    return %c0_i32, %c0_i32_0 : i32, i32
  }
  func.func @transform_9(%arg0: i32) -> (i32, i32) {
    %c0_i32 = arith.constant 0 : i32
    %c0_i32_0 = arith.constant 0 : i32
    %c0_i32_1 = arith.constant 0 : i32
    return %c0_i32, %c0_i32_0 : i32, i32
  }
  func.func @transform_10(%arg0: i32) -> (i32, i32) {
    %c0_i32 = arith.constant 0 : i32
    %c0_i32_0 = arith.constant 0 : i32
    %c0_i32_1 = arith.constant 0 : i32
    return %c0_i32, %c0_i32_0 : i32, i32
  }
  func.func @transform_11(%arg0: i32) -> (i32, i32) {
    %c0_i32 = arith.constant 0 : i32
    %c0_i32_0 = arith.constant 0 : i32
    return %arg0, %c0_i32 : i32, i32
  }
}

</mosaic_0001>

<llo_original>
// kernel: tpu_custom_call.1
$region0: #{tpu_custom_call.1}
  #allocation0 [shape = 'u32[]', space=smem, size = 0x4, offset = 0x4, fixed_abs, tag = 'smem constant byte address 0x4 - core index']
  #allocation1 [shape = 'u32[144,128]{1,0:T(1,128)}', space=vmem, size = 0x12000, scoped, tag = 'internal scratch']
  %s0 = inlined_call_operand.hbm [shape: f32[8,64], index: 0, kind: input, shape index: {}]
  %s1 = inlined_call_operand.vmem [shape: f32[64,32], index: 1, kind: input, shape index: {}]
  %s2 = inlined_call_operand.vmem [shape: f32[1,32], index: 2, kind: input, shape index: {}]
  %s3 = inlined_call_operand.vmem [shape: f32[1,32], index: 3, kind: input, shape index: {}]
  %s4 = inlined_call_operand.vmem [shape: f32[1,32], index: 4, kind: input, shape index: {}]
  %s5 = inlined_call_operand.vmem [shape: f32[32,32], index: 5, kind: input, shape index: {}]
  %s6 = inlined_call_operand.vmem [shape: f32[1,32], index: 6, kind: input, shape index: {}]
  %s7 = inlined_call_operand.vmem [shape: f32[32,32], index: 7, kind: input, shape index: {}]
  %s8 = inlined_call_operand.vmem [shape: f32[1,32], index: 8, kind: input, shape index: {}]
  %s9 = inlined_call_operand.vmem [shape: f32[32,128], index: 9, kind: input, shape index: {}]
  %s10 = inlined_call_operand.vmem [shape: f32[1,128], index: 10, kind: input, shape index: {}]
  %s11 = inlined_call_operand.hbm [shape: f32[8,128], index: 11, kind: output, shape index: {}]
  %s12 = sld [smem:[#allocation0]]
  $region58: #{tpu_custom_call.1} parent=0
    _
  %s14 = ssub.s32 1, %s12
  %s15 = scalar_select 0, %s14, %s12
  $region1: #{tpu_custom_call.1} parent=0
    #allocation2 [shape = 'u8[4096]{0}', space=vmem, size = 0x1000, scoped, tag = 'input window, operand 0, single buffered']
    #allocation3 [shape = 's32[1]{0}', space=sflag, size = 0x4, scoped, tag = 'scoped memory for tpu_custom_call.1']
    #allocation4 [shape = 's32[1]{0}', space=sflag, size = 0x4, scoped, tag = 'scoped memory for tpu_custom_call.1']
    #allocation5 [shape = 'u8[4096]{0}', space=vmem, size = 0x1000, scoped, tag = 'output window, operand 0, single buffered']
    %16 = vsyncpa [#allocation3], 0
    %17 = vsyncpa [#allocation4], 0
    // Predicated region
    $region2: #{tpu_custom_call.1} parent=1 // pred_check
      _
    $region3: #{tpu_custom_call.1} parent=1 // pred_check_branch
      %19 = sbr.rel (0) target = $region5
    $region4: #{tpu_custom_call.1} parent=1 // pred_region
      %s21 = ssub.s32 128, 128
      %22 = vsyncadd [#allocation3], %s21
      %s24 = sshll.u32 [#allocation2], 4
      %s25 = int_to_ptr.vmem [resolvable:$true] %s24
      %27 = dma.hbm_to_vmem [thread:$0]  %s0, 128, %s25, [#allocation3]
    $region5: #{tpu_custom_call.1} parent=1 // pred_fallthru
      _
    // Predicated region
    $region6: #{tpu_custom_call.1} parent=1 // pred_check
      _
    $region7: #{tpu_custom_call.1} parent=1 // pred_check_branch
      %29 = sbr.rel (0) target = $region9
    $region8: #{tpu_custom_call.1} parent=1 // pred_region
      _
    $region9: #{tpu_custom_call.1} parent=1 // pred_fallthru
      _
    // Predicated region
    $region10: #{tpu_custom_call.1} parent=1 // pred_check
      _
    $region11: #{tpu_custom_call.1} parent=1 // pred_check_branch
      %31 = sbr.rel (0) target = $region13
    $region12: #{tpu_custom_call.1} parent=1 // pred_region
      _
    $region13: #{tpu_custom_call.1} parent=1 // pred_fallthru
      _
    // Predicated region
    $region14: #{tpu_custom_call.1} parent=1 // pred_check
      _
    $region15: #{tpu_custom_call.1} parent=1 // pred_check_branch
      %33 = sbr.rel (0) target = $region17
    $region16: #{tpu_custom_call.1} parent=1 // pred_region
      _
    $region17: #{tpu_custom_call.1} parent=1 // pred_fallthru
      _
    // Predicated region
    $region18: #{tpu_custom_call.1} parent=1 // pred_check
      _
    $region19: #{tpu_custom_call.1} parent=1 // pred_check_branch
      %35 = sbr.rel (0) target = $region21
    $region20: #{tpu_custom_call.1} parent=1 // pred_region
      _
    $region21: #{tpu_custom_call.1} parent=1 // pred_fallthru
      _
    // Predicated region
    $region22: #{tpu_custom_call.1} parent=1 // pred_check
      _
    $region23: #{tpu_custom_call.1} parent=1 // pred_check_branch
      %37 = sbr.rel (0) target = $region25
    $region24: #{tpu_custom_call.1} parent=1 // pred_region
      _
    $region25: #{tpu_custom_call.1} parent=1 // pred_fallthru
      _
    // Predicated region
    $region26: #{tpu_custom_call.1} parent=1 // pred_check
      _
    $region27: #{tpu_custom_call.1} parent=1 // pred_check_branch
      %39 = sbr.rel (0) target = $region29
    $region28: #{tpu_custom_call.1} parent=1 // pred_region
      _
    $region29: #{tpu_custom_call.1} parent=1 // pred_fallthru
      _
    // Predicated region
    $region30: #{tpu_custom_call.1} parent=1 // pred_check
      _
    $region31: #{tpu_custom_call.1} parent=1 // pred_check_branch
      %41 = sbr.rel (0) target = $region33
    $region32: #{tpu_custom_call.1} parent=1 // pred_region
      _
    $region33: #{tpu_custom_call.1} parent=1 // pred_fallthru
      _
    // Predicated region
    $region34: #{tpu_custom_call.1} parent=1 // pred_check
      _
    $region35: #{tpu_custom_call.1} parent=1 // pred_check_branch
      %43 = sbr.rel (0) target = $region37
    $region36: #{tpu_custom_call.1} parent=1 // pred_region
      _
    $region37: #{tpu_custom_call.1} parent=1 // pred_fallthru
      _
    // Predicated region
    $region38: #{tpu_custom_call.1} parent=1 // pred_check
      _
    $region39: #{tpu_custom_call.1} parent=1 // pred_check_branch
      %45 = sbr.rel (0) target = $region41
    $region40: #{tpu_custom_call.1} parent=1 // pred_region
      _
    $region41: #{tpu_custom_call.1} parent=1 // pred_fallthru
      _
    // Predicated region
    $region42: #{tpu_custom_call.1} parent=1 // pred_check
      _
    $region43: #{tpu_custom_call.1} parent=1 // pred_check_branch
      %47 = sbr.rel (0) target = $region45
    $region44: #{tpu_custom_call.1} parent=1 // pred_region
      _
    $region45: #{tpu_custom_call.1} parent=1 // pred_fallthru
      _
    // Predicated region
    $region46: #{tpu_custom_call.1} parent=1 // pred_check
      _
    $region47: #{tpu_custom_call.1} parent=1 // pred_check_branch
      %49 = sbr.rel (0) target = $region49
    $region48: #{tpu_custom_call.1} parent=1 // pred_region
      %50 = dma.done [#allocation3], 128
    $region49: #{tpu_custom_call.1} parent=1 // pred_fallthru
      _
    %v51 = vld [vmem:[#allocation2] sm:$0xff]
    %v52 = vld [vmem:[%s1] sm:$0xff]
    %v53 = vld [vmem:[%s1 + $0x8] sm:$0xff]
    %v54 = vld [vmem:[%s1 + $0x10] sm:$0xff]
    %v55 = vld [vmem:[%s1 + $0x18] sm:$0xff]
    %v56 = vld [vmem:[%s1 + $0x20] sm:$0xff]
    %v57 = vld [vmem:[%s1 + $0x28] sm:$0xff]
    %v58 = vld [vmem:[%s1 + $0x30] sm:$0xff]
    %v59 = vld [vmem:[%s1 + $0x38] sm:$0xff]
    %v60 = vld [vmem:[%s2] sm:$0x1]
    %v62 = vlaneseq
    %v63 = vshrl.u32 %v62, 7
    %v64 = vsub.s32 0, %v63
    %v65 = vrot.slane %v60, %v64
    %vm67 = vcmask 523264
    %v69 = vsel %vm67, %v51, 0
    %71 = vmatprep.subr.mxu0 0.0
    %72 = vmatpush1.msra.mxu0 %v52
    %73 = vmatprep.subr.mxu0 0.0
    %74 = vmatpush1.msra.mxu0 %v53
    %75 = vmatprep.subr.mxu0 0.0
    %76 = vmatpush1.msra.mxu0 %v54
    %77 = vmatprep.subr.mxu0 0.0
    %78 = vmatpush1.msra.mxu0 %v55
    %79 = vmatprep.subr.mxu0 0.0
    %80 = vmatpush1.msra.mxu0 %v56
    %81 = vmatprep.subr.mxu0 0.0
    %82 = vmatpush1.msra.mxu0 %v57
    %83 = vmatprep.subr.mxu0 0.0
    %84 = vmatpush1.msra.mxu0 %v58
    %85 = vmatprep.subr.mxu0 0.0
    %86 = vmatpush1.msra.mxu0 %v59
    %87 = vmatprep.subr.mxu0 0.0
    %88 = vmatpush1.msra.mxu0 0.0
    %89 = vmatprep.subr.mxu0 0.0
    %90 = vmatpush1.msra.mxu0 0.0
    %91 = vmatprep.subr.mxu0 0.0
    %92 = vmatpush1.msra.mxu0 0.0
    %93 = vmatprep.subr.mxu0 0.0
    %94 = vmatpush1.msra.mxu0 0.0
    %95 = vmatprep.subr.mxu0 0.0
    %96 = vmatpush1.msra.mxu0 0.0
    %97 = vmatprep.subr.mxu0 0.0
    %98 = vmatpush1.msra.mxu0 0.0
    %99 = vmatprep.subr.mxu0 0.0
    %100 = vmatpush1.msra.mxu0 0.0
    %101 = vmatprep.subr.mxu0 0.0
    %102 = vmatpush1.msra.mxu0 0.0
    %103 = vmatprep.subr.mxu0 0.0
    %104 = vmatpush1.msra.mxu0 0.0
    %105 = vmatprep.subr.mxu0 0.0
    %106 = vmatpush1.msra.mxu0 0.0
    %107 = vmatprep.subr.mxu0 0.0
    %108 = vmatpush1.msra.mxu0 0.0
    %109 = vmatprep.subr.mxu0 0.0
    %110 = vmatpush1.msra.mxu0 0.0
    %111 = vmatprep.subr.mxu0 0.0
    %112 = vmatpush1.msra.mxu0 0.0
    %113 = vmatprep.subr.mxu0 0.0
    %114 = vmatpush1.msra.mxu0 0.0
    %115 = vmatprep.subr.mxu0 0.0
    %116 = vmatpush1.msra.mxu0 0.0
    %117 = vmatprep.subr.mxu0 0.0
    %118 = vmatpush1.msra.mxu0 0.0
    %119 = vmatprep.subr.mxu0 0.0
    %120 = vmatpush1.msra.mxu0 0.0
    %121 = vmatprep.subr.mxu0 0.0
    %122 = vmatpush1.msra.mxu0 0.0
    %123 = vmatprep.subr.mxu0 0.0
    %124 = vmatpush1.msra.mxu0 0.0
    %125 = vmatprep.subr.mxu0 0.0
    %126 = vmatpush1.msra.mxu0 0.0
    %127 = vmatprep.subr.mxu0 0.0
    %128 = vmatpush1.msra.mxu0 0.0
    %129 = vmatprep.subr.mxu0 0.0
    %130 = vmatpush1.msra.mxu0 0.0
    %131 = vmatprep.subr.mxu0 0.0
    %132 = vmatpush1.msra.mxu0 0.0
    %133 = vmatprep.subr.mxu0 0.0
    %134 = vmatpush1.msra.mxu0 0.0
    %135 = vmatprep.mubr.f32.mxu0 0.0
    %136 = vmatmul.mubr.f32.gmra.mrb[0].mxu0 %v69
    %v137 = vpop.f32.mrb[0].mxu0
    %v138 = vadd.f32 %v65, %v137
    %v139 = vpop.f32.mrb[0].mxu0
    %140 = vdwg.mxu0
    %vm141 = vcmask 261120
    %v142 = vsel %vm141, %v138, 0.0
    %143 = vadd.xlane.f32.xlu0 %v142
    %v144 = vpop.xlane.xlu0 %143
    %v145 = vrcp.pop 32.0
    %v146 = vmul.f32 %v144, %v145
    %v147 = vsub.f32 %v138, %v146
    %v148 = vmul.f32 %v147, %v147
    %v149 = vsel %vm141, %v148, 0.0
    %150 = vadd.xlane.f32.xlu0 %v149
    %v151 = vpop.xlane.xlu0 %150
    %v152 = vmul.f32 %v151, %v145
    %v153 = vadd.f32 %v152, 1e-05
    %v154 = vrsqrt.pop %v153
    %v155 = vmul.f32 %v147, %v154
    %v156 = vld [vmem:[%s3] sm:$0x1]
    %v158 = vlaneseq
    %v159 = vshrl.u32 %v158, 7
    %v160 = vsub.s32 0, %v159
    %v161 = vrot.slane %v156, %v160
    %v163 = vmul.f32 %v155, %v161
    %v164 = vld [vmem:[%s4] sm:$0x1]
    %v166 = vlaneseq
    %v167 = vshrl.u32 %v166, 7
    %v168 = vsub.s32 0, %v167
    %v169 = vrot.slane %v164, %v168
    %v171 = vadd.f32 %v163, %v169
    %v172 = vtanh.pop %v171
    %v173 = vld [vmem:[%s5] sm:$0xff]
    %v174 = vld [vmem:[%s5 + $0x8] sm:$0xff]
    %v175 = vld [vmem:[%s5 + $0x10] sm:$0xff]
    %v176 = vld [vmem:[%s5 + $0x18] sm:$0xff]
    %v177 = vld [vmem:[%s6] sm:$0x1]
    %v179 = vlaneseq
    %v180 = vshrl.u32 %v179, 7
    %v181 = vsub.s32 0, %v180
    %v182 = vrot.slane %v177, %v181
    %v185 = vsel %vm141, %v172, 0
    %187 = vmatprep.subr.mxu0 0.0
    %188 = vmatpush1.msra.mxu0 %v173
    %189 = vmatprep.subr.mxu0 0.0
    %190 = vmatpush1.msra.mxu0 %v174
    %191 = vmatprep.subr.mxu0 0.0
    %192 = vmatpush1.msra.mxu0 %v175
    %193 = vmatprep.subr.mxu0 0.0
    %194 = vmatpush1.msra.mxu0 %v176
    %195 = vmatprep.subr.mxu0 0.0
    %196 = vmatpush1.msra.mxu0 0.0
    %197 = vmatprep.subr.mxu0 0.0
    %198 = vmatpush1.msra.mxu0 0.0
    %199 = vmatprep.subr.mxu0 0.0
    %200 = vmatpush1.msra.mxu0 0.0
    %201 = vmatprep.subr.mxu0 0.0
    %202 = vmatpush1.msra.mxu0 0.0
    %203 = vmatprep.subr.mxu0 0.0
    %204 = vmatpush1.msra.mxu0 0.0
    %205 = vmatprep.subr.mxu0 0.0
    %206 = vmatpush1.msra.mxu0 0.0
    %207 = vmatprep.subr.mxu0 0.0
    %208 = vmatpush1.msra.mxu0 0.0
    %209 = vmatprep.subr.mxu0 0.0
    %210 = vmatpush1.msra.mxu0 0.0
    %211 = vmatprep.subr.mxu0 0.0
    %212 = vmatpush1.msra.mxu0 0.0
    %213 = vmatprep.subr.mxu0 0.0
    %214 = vmatpush1.msra.mxu0 0.0
    %215 = vmatprep.subr.mxu0 0.0
    %216 = vmatpush1.msra.mxu0 0.0
    %217 = vmatprep.subr.mxu0 0.0
    %218 = vmatpush1.msra.mxu0 0.0
    %219 = vmatprep.subr.mxu0 0.0
    %220 = vmatpush1.msra.mxu0 0.0
    %221 = vmatprep.subr.mxu0 0.0
    %222 = vmatpush1.msra.mxu0 0.0
    %223 = vmatprep.subr.mxu0 0.0
    %224 = vmatpush1.msra.mxu0 0.0
    %225 = vmatprep.subr.mxu0 0.0
    %226 = vmatpush1.msra.mxu0 0.0
    %227 = vmatprep.subr.mxu0 0.0
    %228 = vmatpush1.msra.mxu0 0.0
    %229 = vmatprep.subr.mxu0 0.0
    %230 = vmatpush1.msra.mxu0 0.0
    %231 = vmatprep.subr.mxu0 0.0
    %232 = vmatpush1.msra.mxu0 0.0
    %233 = vmatprep.subr.mxu0 0.0
    %234 = vmatpush1.msra.mxu0 0.0
    %235 = vmatprep.subr.mxu0 0.0
    %236 = vmatpush1.msra.mxu0 0.0
    %237 = vmatprep.subr.mxu0 0.0
    %238 = vmatpush1.msra.mxu0 0.0
    %239 = vmatprep.subr.mxu0 0.0
    %240 = vmatpush1.msra.mxu0 0.0
    %241 = vmatprep.subr.mxu0 0.0
    %242 = vmatpush1.msra.mxu0 0.0
    %243 = vmatprep.subr.mxu0 0.0
    %244 = vmatpush1.msra.mxu0 0.0
    %245 = vmatprep.subr.mxu0 0.0
    %246 = vmatpush1.msra.mxu0 0.0
    %247 = vmatprep.subr.mxu0 0.0
    %248 = vmatpush1.msra.mxu0 0.0
    %249 = vmatprep.subr.mxu0 0.0
    %250 = vmatpush1.msra.mxu0 0.0
    %251 = vmatprep.mubr.f32.mxu0 0.0
    %252 = vmatmul.mubr.f32.gmra.mrb[0].mxu0 %v185
    %v253 = vpop.f32.mrb[0].mxu0
    %v254 = vadd.f32 %v182, %v253
    %v255 = vpop.f32.mrb[0].mxu0
    %256 = vdwg.mxu0
    %v257 = vmax.f32 %v254, 0.0
    %v258 = vld [vmem:[%s7] sm:$0xff]
    %v259 = vld [vmem:[%s7 + $0x8] sm:$0xff]
    %v260 = vld [vmem:[%s7 + $0x10] sm:$0xff]
    %v261 = vld [vmem:[%s7 + $0x18] sm:$0xff]
    %v262 = vld [vmem:[%s8] sm:$0x1]
    %v264 = vlaneseq
    %v265 = vshrl.u32 %v264, 7
    %v266 = vsub.s32 0, %v265
    %v267 = vrot.slane %v262, %v266
    %v270 = vsel %vm141, %v257, 0
    %272 = vmatprep.subr.mxu0 0.0
    %273 = vmatpush1.msra.mxu0 %v258
    %274 = vmatprep.subr.mxu0 0.0
    %275 = vmatpush1.msra.mxu0 %v259
    %276 = vmatprep.subr.mxu0 0.0
    %277 = vmatpush1.msra.mxu0 %v260
    %278 = vmatprep.subr.mxu0 0.0
    %279 = vmatpush1.msra.mxu0 %v261
    %280 = vmatprep.subr.mxu0 0.0
    %281 = vmatpush1.msra.mxu0 0.0
    %282 = vmatprep.subr.mxu0 0.0
    %283 = vmatpush1.msra.mxu0 0.0
    %284 = vmatprep.subr.mxu0 0.0
    %285 = vmatpush1.msra.mxu0 0.0
    %286 = vmatprep.subr.mxu0 0.0
    %287 = vmatpush1.msra.mxu0 0.0
    %288 = vmatprep.subr.mxu0 0.0
    %289 = vmatpush1.msra.mxu0 0.0
    %290 = vmatprep.subr.mxu0 0.0
    %291 = vmatpush1.msra.mxu0 0.0
    %292 = vmatprep.subr.mxu0 0.0
    %293 = vmatpush1.msra.mxu0 0.0
    %294 = vmatprep.subr.mxu0 0.0
    %295 = vmatpush1.msra.mxu0 0.0
    %296 = vmatprep.subr.mxu0 0.0
    %297 = vmatpush1.msra.mxu0 0.0
    %298 = vmatprep.subr.mxu0 0.0
    %299 = vmatpush1.msra.mxu0 0.0
    %300 = vmatprep.subr.mxu0 0.0
    %301 = vmatpush1.msra.mxu0 0.0
    %302 = vmatprep.subr.mxu0 0.0
    %303 = vmatpush1.msra.mxu0 0.0
    %304 = vmatprep.subr.mxu0 0.0
    %305 = vmatpush1.msra.mxu0 0.0
    %306 = vmatprep.subr.mxu0 0.0
    %307 = vmatpush1.msra.mxu0 0.0
    %308 = vmatprep.subr.mxu0 0.0
    %309 = vmatpush1.msra.mxu0 0.0
    %310 = vmatprep.subr.mxu0 0.0
    %311 = vmatpush1.msra.mxu0 0.0
    %312 = vmatprep.subr.mxu0 0.0
    %313 = vmatpush1.msra.mxu0 0.0
    %314 = vmatprep.subr.mxu0 0.0
    %315 = vmatpush1.msra.mxu0 0.0
    %316 = vmatprep.subr.mxu0 0.0
    %317 = vmatpush1.msra.mxu0 0.0
    %318 = vmatprep.subr.mxu0 0.0
    %319 = vmatpush1.msra.mxu0 0.0
    %320 = vmatprep.subr.mxu0 0.0
    %321 = vmatpush1.msra.mxu0 0.0
    %322 = vmatprep.subr.mxu0 0.0
    %323 = vmatpush1.msra.mxu0 0.0
    %324 = vmatprep.subr.mxu0 0.0
    %325 = vmatpush1.msra.mxu0 0.0
    %326 = vmatprep.subr.mxu0 0.0
    %327 = vmatpush1.msra.mxu0 0.0
    %328 = vmatprep.subr.mxu0 0.0
    %329 = vmatpush1.msra.mxu0 0.0
    %330 = vmatprep.subr.mxu0 0.0
    %331 = vmatpush1.msra.mxu0 0.0
    %332 = vmatprep.subr.mxu0 0.0
    %333 = vmatpush1.msra.mxu0 0.0
    %334 = vmatprep.subr.mxu0 0.0
    %335 = vmatpush1.msra.mxu0 0.0
    %336 = vmatprep.mubr.f32.mxu0 0.0
    %337 = vmatmul.mubr.f32.gmra.mrb[0].mxu0 %v270
    %v338 = vpop.f32.mrb[0].mxu0
    %v339 = vadd.f32 %v267, %v338
    %v340 = vpop.f32.mrb[0].mxu0
    %341 = vdwg.mxu0
    %v342 = vmax.f32 %v339, 0.0
    %v343 = vld [vmem:[%s9] sm:$0xff]
    %v344 = vld [vmem:[%s9 + $0x8] sm:$0xff]
    %v345 = vld [vmem:[%s9 + $0x10] sm:$0xff]
    %v346 = vld [vmem:[%s9 + $0x18] sm:$0xff]
    %v347 = vld [vmem:[%s10] sm:$0x1]
    %v349 = vlaneseq
    %v350 = vshrl.u32 %v349, 7
    %v351 = vsub.s32 0, %v350
    %v352 = vrot.slane %v347, %v351
    %v355 = vsel %vm141, %v342, 0
    %357 = vmatprep.subr.mxu0 0.0
    %358 = vmatpush1.msra.mxu0 %v343
    %359 = vmatprep.subr.mxu0 0.0
    %360 = vmatpush1.msra.mxu0 %v344
    %361 = vmatprep.subr.mxu0 0.0
    %362 = vmatpush1.msra.mxu0 %v345
    %363 = vmatprep.subr.mxu0 0.0
    %364 = vmatpush1.msra.mxu0 %v346
    %365 = vmatprep.subr.mxu0 0.0
    %366 = vmatpush1.msra.mxu0 0.0
    %367 = vmatprep.subr.mxu0 0.0
    %368 = vmatpush1.msra.mxu0 0.0
    %369 = vmatprep.subr.mxu0 0.0
    %370 = vmatpush1.msra.mxu0 0.0
    %371 = vmatprep.subr.mxu0 0.0
    %372 = vmatpush1.msra.mxu0 0.0
    %373 = vmatprep.subr.mxu0 0.0
    %374 = vmatpush1.msra.mxu0 0.0
    %375 = vmatprep.subr.mxu0 0.0
    %376 = vmatpush1.msra.mxu0 0.0
    %377 = vmatprep.subr.mxu0 0.0
    %378 = vmatpush1.msra.mxu0 0.0
    %379 = vmatprep.subr.mxu0 0.0
    %380 = vmatpush1.msra.mxu0 0.0
    %381 = vmatprep.subr.mxu0 0.0
    %382 = vmatpush1.msra.mxu0 0.0
    %383 = vmatprep.subr.mxu0 0.0
    %384 = vmatpush1.msra.mxu0 0.0
    %385 = vmatprep.subr.mxu0 0.0
    %386 = vmatpush1.msra.mxu0 0.0
    %387 = vmatprep.subr.mxu0 0.0
    %388 = vmatpush1.msra.mxu0 0.0
    %389 = vmatprep.subr.mxu0 0.0
    %390 = vmatpush1.msra.mxu0 0.0
    %391 = vmatprep.subr.mxu0 0.0
    %392 = vmatpush1.msra.mxu0 0.0
    %393 = vmatprep.subr.mxu0 0.0
    %394 = vmatpush1.msra.mxu0 0.0
    %395 = vmatprep.subr.mxu0 0.0
    %396 = vmatpush1.msra.mxu0 0.0
    %397 = vmatprep.subr.mxu0 0.0
    %398 = vmatpush1.msra.mxu0 0.0
    %399 = vmatprep.subr.mxu0 0.0
    %400 = vmatpush1.msra.mxu0 0.0
    %401 = vmatprep.subr.mxu0 0.0
    %402 = vmatpush1.msra.mxu0 0.0
    %403 = vmatprep.subr.mxu0 0.0
    %404 = vmatpush1.msra.mxu0 0.0
    %405 = vmatprep.subr.mxu0 0.0
    %406 = vmatpush1.msra.mxu0 0.0
    %407 = vmatprep.subr.mxu0 0.0
    %408 = vmatpush1.msra.mxu0 0.0
    %409 = vmatprep.subr.mxu0 0.0
    %410 = vmatpush1.msra.mxu0 0.0
    %411 = vmatprep.subr.mxu0 0.0
    %412 = vmatpush1.msra.mxu0 0.0
    %413 = vmatprep.subr.mxu0 0.0
    %414 = vmatpush1.msra.mxu0 0.0
    %415 = vmatprep.subr.mxu0 0.0
    %416 = vmatpush1.msra.mxu0 0.0
    %417 = vmatprep.subr.mxu0 0.0
    %418 = vmatpush1.msra.mxu0 0.0
    %419 = vmatprep.subr.mxu0 0.0
    %420 = vmatpush1.msra.mxu0 0.0
    %421 = vmatprep.mubr.f32.mxu0 0.0
    %422 = vmatmul.mubr.f32.gmra.mrb[0].mxu0 %v355
    %v423 = vpop.f32.mrb[0].mxu0
    %v424 = vadd.f32 %v352, %v423
    %v425 = vpop.f32.mrb[0].mxu0
    %426 = vdwg.mxu0
    %v427 = vtanh.pop %v424
    %428 = vst [vmem:[#allocation5] sm:$0xff] %v427
    // Predicated region
    $region50: #{tpu_custom_call.1} parent=1 // pred_check
      _
    $region51: #{tpu_custom_call.1} parent=1 // pred_check_branch
      %430 = sbr.rel (0) target = $region53
    $region52: #{tpu_custom_call.1} parent=1 // pred_region
      %s432 = ssub.s32 128, 128
      %433 = vsyncadd [#allocation4], %s432
      %s435 = sshll.u32 [#allocation5], 4
      %s436 = int_to_ptr.vmem [resolvable:$true] %s435
      %438 = dma.vmem_to_hbm [thread:$0]  %s436, 128, %s11, [#allocation4]
    $region53: #{tpu_custom_call.1} parent=1 // pred_fallthru
      _
    // Predicated region
    $region54: #{tpu_custom_call.1} parent=1 // pred_check
      _
    $region55: #{tpu_custom_call.1} parent=1 // pred_check_branch
      %440 = sbr.rel (0) target = $region57
    $region56: #{tpu_custom_call.1} parent=1 // pred_region
      %441 = dma.done [#allocation4], 128
    $region57: #{tpu_custom_call.1} parent=1 // pred_fallthru
      _
    %442 = vsyncpa [#allocation3], 1
    %443 = vsyncpa [#allocation4], 1

</llo_original>
